<compile_context>
chip_gen: v6e
topology: v6e:2x2x1
jax: 0.10.0
libtpu: 0.0.40
codegen_flags: <defaults>
</compile_context>

<pallas_src>
import functools
import math

import jax
import jax.numpy as jnp
from jax.experimental import pallas as pl
from jax.experimental.pallas import tpu as pltpu


def _round_up(n, m):
    return ((n + m - 1) // m) * m


# ----------------------------------------------------------------------------
# Feature probe: single-buffered (pl.Buffered(1)) resident-weight BlockSpecs.
# ----------------------------------------------------------------------------
_BUFFERED_OK = None


def _buffered_supported():
    global _BUFFERED_OK
    if _BUFFERED_OK is not None:
        return _BUFFERED_OK
    ok = False
    if hasattr(pl, "Buffered"):
        try:
            spec = pl.BlockSpec((8, 128), lambda i: (0, 0),
                                pipeline_mode=pl.Buffered(1))

            def _k(x_ref, o_ref):
                o_ref[...] = x_ref[...] + 1.0

            x = jnp.zeros((8, 128), jnp.float32)
            y = pl.pallas_call(
                _k,
                out_shape=jax.ShapeDtypeStruct((8, 128), jnp.float32),
                grid=(1,),
                in_specs=[spec],
                out_specs=pl.BlockSpec((8, 128), lambda i: (0, 0)),
            )(x)
            jax.block_until_ready(y)
            ok = True
        except Exception:
            ok = False
    _BUFFERED_OK = ok
    return ok


def _weight_spec(block_shape, index_map):
    """BlockSpec for a weight that stays resident across all grid steps."""
    if _buffered_supported():
        return pl.BlockSpec(block_shape, index_map, pipeline_mode=pl.Buffered(1))
    return pl.BlockSpec(block_shape, index_map)


# ----------------------------------------------------------------------------
# Fused MLoraLinear kernel
# ----------------------------------------------------------------------------
def _mlora_kernel(x_ref, q_ref, wt_ref, b_ref, be2_ref, aall_ref, bt2_ref,
                  wg_ref, bg_ref, gam_ref, bet_ref, o_ref, acc_ref,
                  *, num_E, d_out, r, eps):
    # x_ref   : (TB, D_in) f32      q_ref  : (TB, D_q) f32
    # wt_ref  : (D_in, D_out) bf16  b_ref / be2_ref : (1, D_out) f32
    # aall_ref: (D_in, num_E*r) bf16
    # bt2_ref : (num_E, r, D_out) f32   (pre-scaled by 2*scaling)
    # wg_ref  : (D_q, num_E*D_out) bf16
    # bg/gam/bet_ref : (1, num_E*D_out) f32
    # o_ref   : (TB, D_out) f32     acc_ref: (TB, D_out) f32 VMEM scratch
    x = x_ref[...].astype(jnp.bfloat16)          # bf16 MXU operands
    q = q_ref[...].astype(jnp.bfloat16)

    # Base linear -> f32 accumulator in VMEM scratch (short live ranges).
    acc_ref[...] = (jnp.dot(x, wt_ref[...], preferred_element_type=jnp.float32)
                    + b_ref[...])

    # All LoRA-A projections in one wide matmul: (TB, num_E*r).
    t_all = jnp.dot(x, aall_ref[...], preferred_element_type=jnp.float32)

    # All gate pre-activations in one wide matmul: (TB, num_E*D_out).
    gp_all = (jnp.dot(q, wg_ref[...], preferred_element_type=jnp.float32)
              + bg_ref[...])

    for e in range(num_E):                                   # static unroll
        lo, hi = e * d_out, (e + 1) * d_out

        # --- gate e: LayerNorm (single-pass stats) + sigmoid (EUP).
        gp = gp_all[:, lo:hi]
        mu = jnp.mean(gp, axis=-1, keepdims=True)
        ms = jnp.mean(gp * gp, axis=-1, keepdims=True)
        var = ms - mu * mu
        gn = (gp - mu) * jax.lax.rsqrt(var + eps)
        gn = gn * gam_ref[:, lo:hi] + bet_ref[:, lo:hi]
        g = pl.reciprocal(1.0 + jnp.exp(-gn), approx=True)   # sigmoid on EUP

        # --- expert e (low-rank, constants pre-folded): 2*(x@(s*B@A).T + b)
        t_e = t_all[:, e * r:(e + 1) * r]                    # (TB, r)
        ey2 = (jnp.dot(t_e, bt2_ref[e], preferred_element_type=jnp.float32)
               + be2_ref[...])                               # (TB, D_out)

        acc_ref[...] += g * ey2

    o_ref[...] = acc_ref[...].astype(o_ref.dtype)


# ----------------------------------------------------------------------------
# One-time parameter prep (hoisted out of the per-call forward path)
# ----------------------------------------------------------------------------
def prepare_mlora_params(W, b, lora_A, lora_B, gate_W, gate_b,
                         ln_gamma, ln_beta, *, r, lora_alpha):
    num_E = lora_A.shape[0]
    D_out, D_in = W.shape
    D_q = gate_W.shape[-1]
    scaling = lora_alpha / r
    return {
        # base linear: transposed once, bf16 MXU operand
        "wt": W.T.astype(jnp.bfloat16),                                    # (D_in, D_out)
        "b": b.reshape(1, D_out).astype(jnp.float32),
        "b2": (2.0 * b).reshape(1, D_out).astype(jnp.float32),             # pre-doubled
        # LoRA A, all experts stacked along lanes: (D_in, num_E*r)
        "a_all": (jnp.transpose(lora_A, (2, 0, 1))
                  .reshape(D_in, num_E * r).astype(jnp.bfloat16)),
        # LoRA B, pre-scaled by 2*scaling (tiny, kept f32): (num_E, r, D_out)
        "bt2": (jnp.transpose(lora_B, (0, 2, 1)) * (2.0 * scaling)
                ).astype(jnp.float32),
        # gate weights, all experts stacked along lanes: (D_q, num_E*D_out)
        "wg_all": (jnp.transpose(gate_W, (2, 0, 1))
                   .reshape(D_q, num_E * D_out).astype(jnp.bfloat16)),
        "bg_all": gate_b.reshape(1, num_E * D_out).astype(jnp.float32),
        "gam_all": ln_gamma.reshape(1, num_E * D_out).astype(jnp.float32),
        "bet_all": ln_beta.reshape(1, num_E * D_out).astype(jnp.float32),
    }


# ----------------------------------------------------------------------------
# Wrapper: pallas_call with batch-row tiling
# ----------------------------------------------------------------------------
def mlora_linear_forward(x, query, params, *, block_rows=128, ln_eps=1e-5):
    """MLoraLinear.forward (eval mode). x: (B, D_in), query: (B, D_q)."""
    B, D_in = x.shape
    D_q = query.shape[1]
    num_E, r, D_out = params["bt2"].shape

    # Row tile: sublane-aligned; try to give the v7x megacore >= 2 parallel steps.
    TB = min(block_rows, _round_up(B, 8))
    if B >= 16 and (B + TB - 1) // TB < 2:
        TB = _round_up((B + 1) // 2, 8)
    Bp = _round_up(B, TB)
    if Bp != B:
        # TODO(synk): ragged last tile could be masked in-kernel instead of padded.
        x = jnp.pad(x, ((0, Bp - B), (0, 0)))
        query = jnp.pad(query, ((0, Bp - B), (0, 0)))
    grid_rows = Bp // TB

    # VMEM budget & cost estimate.
    weight_bytes = sum(int(v.size) * v.dtype.itemsize for v in params.values())
    act_tile_bytes = TB * (D_in + D_q + D_out) * 4
    buf_mult = 1 if _buffered_supported() else 2
    vmem_need = buf_mult * weight_bytes + 2 * act_tile_bytes + TB * D_out * 4
    try:
        vmem_cap = int(pltpu.get_tpu_info().vmem_capacity_bytes)
    except Exception:
        vmem_cap = 64 * 1024 * 1024
    vmem_limit = int(min(max(32 * 1024 * 1024, 2 * vmem_need + (8 << 20)),
                         int(0.75 * vmem_cap)))

    flops = 2 * Bp * (D_in * D_out + D_in * num_E * r
                      + num_E * r * D_out + D_q * num_E * D_out)
    cost = pl.CostEstimate(
        flops=int(flops),
        transcendentals=int(Bp * num_E * (D_out + 1)),
        bytes_accessed=int(x.size * x.dtype.itemsize
                           + query.size * query.dtype.itemsize
                           + weight_bytes + Bp * D_out * 4),
    )

    const2 = lambda i: (0, 0)
    const3 = lambda i: (0, 0, 0)

    kernel = functools.partial(_mlora_kernel, num_E=num_E, d_out=D_out,
                               r=r, eps=ln_eps)

    out = pl.pallas_call(
        kernel,
        out_shape=jax.ShapeDtypeStruct((Bp, D_out), jnp.float32),
        grid=(grid_rows,),
        in_specs=[
            pl.BlockSpec((TB, D_in), lambda i: (i, 0)),        # x row tile
            pl.BlockSpec((TB, D_q), lambda i: (i, 0)),         # query row tile
            _weight_spec((D_in, D_out), const2),               # W^T (bf16, resident)
            _weight_spec((1, D_out), const2),                  # b
            _weight_spec((1, D_out), const2),                  # 2*b (expert path)
            _weight_spec((D_in, num_E * r), const2),           # A_all (bf16)
            _weight_spec((num_E, r, D_out), const3),           # 2*s*B^T stack
            _weight_spec((D_q, num_E * D_out), const2),        # Wg_all (bf16)
            _weight_spec((1, num_E * D_out), const2),          # gate biases
            _weight_spec((1, num_E * D_out), const2),          # LN gamma
            _weight_spec((1, num_E * D_out), const2),          # LN beta
        ],
        out_specs=pl.BlockSpec((TB, D_out), lambda i: (i, 0)),
        scratch_shapes=[pltpu.VMEM((TB, D_out), jnp.float32)],
        compiler_params=pltpu.CompilerParams(
            dimension_semantics=("parallel",),
            vmem_limit_bytes=vmem_limit),
        cost_estimate=cost,
    )(x, query, params["wt"], params["b"], params["b2"], params["a_all"],
      params["bt2"], params["wg_all"], params["bg_all"], params["gam_all"],
      params["bet_all"])
    return out[:B]


# ----------------------------------------------------------------------------
# Demo / correctness check
# ----------------------------------------------------------------------------
if __name__ == "__main__":
    num_E = 3
    B, D_in, D_out, D_q = 8, 32, 16, 768   # D_q = 768 hardwired by the module's gates
    r, lora_alpha = 4, 8

    key = jax.random.PRNGKey(0)
    kx, kq, kw, kb, ka, kbl, kgw, kgb, kg, kbeta = jax.random.split(key, 10)

    x = jax.random.normal(kx, (B, D_in), jnp.float32)
    query = jax.random.normal(kq, (B, D_q), jnp.float32)   # set via get_query()

    # base nn.Linear parameters
    bound_w = 1.0 / math.sqrt(D_in)
    W = jax.random.uniform(kw, (D_out, D_in), jnp.float32, -bound_w, bound_w)
    b = jax.random.uniform(kb, (D_out,), jnp.float32, -bound_w, bound_w)

    # LoRA experts: A ~ kaiming_uniform(a=sqrt(5)); B is zeros in the module's
    # reset_parameters() -> use small random values so the path is nontrivial.
    bound_a = 1.0 / math.sqrt(D_in)
    lora_A = jax.random.uniform(ka, (num_E, r, D_in), jnp.float32, -bound_a, bound_a)
    lora_B = jax.random.uniform(kbl, (num_E, D_out, r), jnp.float32, -0.1, 0.1)

    # gates: Linear(768 -> D_out) + LayerNorm(D_out) (+ Dropout -> identity) + Sigmoid
    bound_g = 1.0 / math.sqrt(D_q)
    gate_W = jax.random.uniform(kgw, (num_E, D_out, D_q), jnp.float32, -bound_g, bound_g)
    gate_b = jax.random.uniform(kgb, (num_E, D_out), jnp.float32, -bound_g, bound_g)
    ln_gamma = 1.0 + 0.05 * jax.random.normal(kg, (num_E, D_out), jnp.float32)
    ln_beta = 0.05 * jax.random.normal(kbeta, (num_E, D_out), jnp.float32)

    # One-time weight prep (hoisted out of the forward path).
    params = jax.tree_util.tree_map(
        jax.block_until_ready,
        prepare_mlora_params(W, b, lora_A, lora_B, gate_W, gate_b,
                             ln_gamma, ln_beta, r=r, lora_alpha=lora_alpha))

    fwd = jax.jit(functools.partial(mlora_linear_forward, block_rows=128))
    y = jax.block_until_ready(fwd(x, query, params))

    # Pure-JAX reference matching the PyTorch module semantics (eval mode),
    # using the same bf16-rounded MXU operands with f32 math.
    scaling = lora_alpha / r
    f32 = jnp.float32
    xb = x.astype(jnp.bfloat16).astype(f32)
    qb = query.astype(jnp.bfloat16).astype(f32)
    Wb = W.astype(jnp.bfloat16).astype(f32)
    Ab = lora_A.astype(jnp.bfloat16).astype(f32)
    Gb = gate_W.astype(jnp.bfloat16).astype(f32)

    out_ref = xb @ Wb.T + b
    for e in range(num_E):
        t = xb @ Ab[e].T
        ey = (t @ lora_B[e].T) * scaling + b
        gp = qb @ Gb[e].T + gate_b[e]
        mu = gp.mean(-1, keepdims=True)
        var = ((gp - mu) ** 2).mean(-1, keepdims=True)
        gn = (gp - mu) / jnp.sqrt(var + 1e-5)
        gn = gn * ln_gamma[e] + ln_beta[e]
        out_ref = out_ref + 2.0 * jax.nn.sigmoid(gn) * ey

    assert y.shape == (B, D_out), y.shape
    max_err = float(jnp.max(jnp.abs(y - out_ref)))
    assert jnp.allclose(y, out_ref, atol=2e-2, rtol=2e-2), max_err

    print("KERNEL_OK")
</pallas_src>

<mosaic_0001>
module attributes {stable_mosaic.version = 11 : i64} {
  func.func @_mlora_kernel(%arg0: i32, %arg1: memref<8x32xf32, #tpu.memory_space<vmem>>, %arg2: memref<8x768xf32, #tpu.memory_space<vmem>>, %arg3: memref<32x16xbf16, #tpu.memory_space<vmem>>, %arg4: memref<1x16xf32, #tpu.memory_space<vmem>>, %arg5: memref<1x16xf32, #tpu.memory_space<vmem>>, %arg6: memref<32x12xbf16, #tpu.memory_space<vmem>>, %arg7: memref<3x4x16xf32, #tpu.memory_space<vmem>>, %arg8: memref<768x48xbf16, #tpu.memory_space<vmem>>, %arg9: memref<1x48xf32, #tpu.memory_space<vmem>>, %arg10: memref<1x48xf32, #tpu.memory_space<vmem>>, %arg11: memref<1x48xf32, #tpu.memory_space<vmem>>, %arg12: memref<8x16xf32, #tpu.memory_space<vmem>>, %arg13: memref<8x16xf32, #tpu.memory_space<vmem>>) attributes {dimension_semantics = [#tpu.dimension_semantics<parallel>], iteration_bounds = array<i64: 1>, scalar_prefetch = 0 : i64, scratch_operands = 1 : i64, tpu.core_type = #tpu.core_type<tc>, window_params = [{transform_indices = @transform_0, window_bounds = array<i64: 8, 32>}, {transform_indices = @transform_1, window_bounds = array<i64: 8, 768>}, {pipeline_mode = #tpu.pipeline_mode<synchronous>, transform_indices = @transform_2, window_bounds = array<i64: 32, 16>}, {pipeline_mode = #tpu.pipeline_mode<synchronous>, transform_indices = @transform_3, window_bounds = array<i64: 1, 16>}, {pipeline_mode = #tpu.pipeline_mode<synchronous>, transform_indices = @transform_4, window_bounds = array<i64: 1, 16>}, {pipeline_mode = #tpu.pipeline_mode<synchronous>, transform_indices = @transform_5, window_bounds = array<i64: 32, 12>}, {pipeline_mode = #tpu.pipeline_mode<synchronous>, transform_indices = @transform_6, window_bounds = array<i64: 3, 4, 16>}, {pipeline_mode = #tpu.pipeline_mode<synchronous>, transform_indices = @transform_7, window_bounds = array<i64: 768, 48>}, {pipeline_mode = #tpu.pipeline_mode<synchronous>, transform_indices = @transform_8, window_bounds = array<i64: 1, 48>}, {pipeline_mode = #tpu.pipeline_mode<synchronous>, transform_indices = @transform_9, window_bounds = array<i64: 1, 48>}, {pipeline_mode = #tpu.pipeline_mode<synchronous>, transform_indices = @transform_10, window_bounds = array<i64: 1, 48>}, {transform_indices = @transform_11, window_bounds = array<i64: 8, 16>}]} {
    %c0 = arith.constant 0 : index
    %c0_0 = arith.constant 0 : index
    %0 = vector.load %arg1[%c0, %c0_0] : memref<8x32xf32, #tpu.memory_space<vmem>>, vector<8x32xf32>
    %1 = arith.truncf %0 : vector<8x32xf32> to vector<8x32xbf16>
    %c0_1 = arith.constant 0 : index
    %c0_2 = arith.constant 0 : index
    %2 = vector.load %arg2[%c0_1, %c0_2] : memref<8x768xf32, #tpu.memory_space<vmem>>, vector<8x768xf32>
    %3 = arith.truncf %2 : vector<8x768xf32> to vector<8x768xbf16>
    %c0_3 = arith.constant 0 : index
    %c0_4 = arith.constant 0 : index
    %4 = vector.load %arg3[%c0_3, %c0_4] : memref<32x16xbf16, #tpu.memory_space<vmem>>, vector<32x16xbf16>
    %cst = arith.constant dense<0.000000e+00> : vector<8x16xf32>
    %5 = tpu.matmul %1, %4, %cst {dimension_numbers = #tpu.dot_dimension_numbers<[1], [0], [0], [1], [0, 0, 1, 1], [], []>} : vector<8x32xbf16>, vector<32x16xbf16>, vector<8x16xf32> -> vector<8x16xf32>
    %c0_5 = arith.constant 0 : index
    %c0_6 = arith.constant 0 : index
    %6 = vector.load %arg4[%c0_5, %c0_6] : memref<1x16xf32, #tpu.memory_space<vmem>>, vector<1x16xf32>
    %7 = vector.broadcast %6 : vector<1x16xf32> to vector<8x16xf32>
    %8 = arith.addf %5, %7 : vector<8x16xf32>
    %c0_7 = arith.constant 0 : index
    %c0_8 = arith.constant 0 : index
    %9 = vector.load %arg13[%c0_7, %c0_8] : memref<8x16xf32, #tpu.memory_space<vmem>>, vector<8x16xf32>
    tpu.vector_store %arg13[%c0_7, %c0_8], %8 {strides = array<i32>} : memref<8x16xf32, #tpu.memory_space<vmem>>, vector<8x16xf32>,
    %c0_9 = arith.constant 0 : index
    %c0_10 = arith.constant 0 : index
    %10 = vector.load %arg6[%c0_9, %c0_10] : memref<32x12xbf16, #tpu.memory_space<vmem>>, vector<32x12xbf16>
    %cst_11 = arith.constant dense<0.000000e+00> : vector<8x12xf32>
    %11 = tpu.matmul %1, %10, %cst_11 {dimension_numbers = #tpu.dot_dimension_numbers<[1], [0], [0], [1], [0, 0, 1, 1], [], []>} : vector<8x32xbf16>, vector<32x12xbf16>, vector<8x12xf32> -> vector<8x12xf32>
    %c0_12 = arith.constant 0 : index
    %c0_13 = arith.constant 0 : index
    %12 = vector.load %arg8[%c0_12, %c0_13] : memref<768x48xbf16, #tpu.memory_space<vmem>>, vector<768x48xbf16>
    %cst_14 = arith.constant dense<0.000000e+00> : vector<8x48xf32>
    %13 = tpu.matmul %3, %12, %cst_14 {dimension_numbers = #tpu.dot_dimension_numbers<[1], [0], [0], [1], [0, 0, 1, 1], [], []>} : vector<8x768xbf16>, vector<768x48xbf16>, vector<8x48xf32> -> vector<8x48xf32>
    %c0_15 = arith.constant 0 : index
    %c0_16 = arith.constant 0 : index
    %14 = vector.load %arg9[%c0_15, %c0_16] : memref<1x48xf32, #tpu.memory_space<vmem>>, vector<1x48xf32>
    %15 = vector.broadcast %14 : vector<1x48xf32> to vector<8x48xf32>
    %16 = arith.addf %13, %15 : vector<8x48xf32>
    %17 = vector.extract_strided_slice %16 {offsets = [0, 0], sizes = [8, 16], strides = [1, 1]} : vector<8x48xf32> to vector<8x16xf32>
    %cst_17 = arith.constant dense<0.000000e+00> : vector<8xf32>
    %18 = vector.multi_reduction <add>, %17, %cst_17 [1] : vector<8x16xf32> to vector<8xf32>
    %19 = vector.shape_cast %18 : vector<8xf32> to vector<8x1xf32>
    %cst_18 = arith.constant 1.600000e+01 : f32
    %20 = vector.broadcast %cst_18 : f32 to vector<8x1xf32>
    %21 = arith.divf %19, %20 : vector<8x1xf32>
    %22 = arith.mulf %17, %17 : vector<8x16xf32>
    %cst_19 = arith.constant dense<0.000000e+00> : vector<8xf32>
    %23 = vector.multi_reduction <add>, %22, %cst_19 [1] : vector<8x16xf32> to vector<8xf32>
    %24 = vector.shape_cast %23 : vector<8xf32> to vector<8x1xf32>
    %cst_20 = arith.constant 1.600000e+01 : f32
    %25 = vector.broadcast %cst_20 : f32 to vector<8x1xf32>
    %26 = arith.divf %24, %25 : vector<8x1xf32>
    %27 = arith.mulf %21, %21 : vector<8x1xf32>
    %28 = arith.subf %26, %27 : vector<8x1xf32>
    %29 = vector.broadcast %21 : vector<8x1xf32> to vector<8x16xf32>
    %30 = arith.subf %17, %29 : vector<8x16xf32>
    %cst_21 = arith.constant 9.99999974E-6 : f32
    %31 = vector.broadcast %cst_21 : f32 to vector<8x1xf32>
    %32 = arith.addf %28, %31 : vector<8x1xf32>
    %33 = math.rsqrt %32 : vector<8x1xf32>
    %34 = vector.broadcast %33 : vector<8x1xf32> to vector<8x16xf32>
    %35 = arith.mulf %30, %34 : vector<8x16xf32>
    %c0_22 = arith.constant 0 : index
    %c0_23 = arith.constant 0 : index
    %36 = vector.load %arg10[%c0_22, %c0_23] : memref<1x48xf32, #tpu.memory_space<vmem>>, vector<1x16xf32>
    %37 = vector.broadcast %36 : vector<1x16xf32> to vector<8x16xf32>
    %38 = arith.mulf %35, %37 : vector<8x16xf32>
    %c0_24 = arith.constant 0 : index
    %c0_25 = arith.constant 0 : index
    %39 = vector.load %arg11[%c0_24, %c0_25] : memref<1x48xf32, #tpu.memory_space<vmem>>, vector<1x16xf32>
    %40 = vector.broadcast %39 : vector<1x16xf32> to vector<8x16xf32>
    %41 = arith.addf %38, %40 : vector<8x16xf32>
    %cst_26 = arith.constant 0.000000e+00 : f32
    %42 = vector.broadcast %cst_26 : f32 to vector<8x16xf32>
    %43 = arith.subf %42, %41 : vector<8x16xf32>
    %44 = math.exp %43 : vector<8x16xf32>
    %cst_27 = arith.constant 1.000000e+00 : f32
    %45 = vector.broadcast %cst_27 : f32 to vector<8x16xf32>
    %46 = arith.addf %45, %44 : vector<8x16xf32>
    %47 = tpu.reciprocal %46 {approx = true} : vector<8x16xf32> -> vector<8x16xf32>
    %48 = vector.extract_strided_slice %11 {offsets = [0, 0], sizes = [8, 4], strides = [1, 1]} : vector<8x12xf32> to vector<8x4xf32>
    %c0_28 = arith.constant 0 : index
    %c0_29 = arith.constant 0 : index
    %c0_30 = arith.constant 0 : index
    %49 = vector.load %arg7[%c0_28, %c0_29, %c0_30] : memref<3x4x16xf32, #tpu.memory_space<vmem>>, vector<1x4x16xf32>
    %50 = vector.shape_cast %49 : vector<1x4x16xf32> to vector<4x16xf32>
    %cst_31 = arith.constant dense<0.000000e+00> : vector<8x16xf32>
    %51 = tpu.matmul %48, %50, %cst_31 {dimension_numbers = #tpu.dot_dimension_numbers<[1], [0], [0], [1], [0, 0, 1, 1], [], []>} : vector<8x4xf32>, vector<4x16xf32>, vector<8x16xf32> -> vector<8x16xf32>
    %c0_32 = arith.constant 0 : index
    %c0_33 = arith.constant 0 : index
    %52 = vector.load %arg5[%c0_32, %c0_33] : memref<1x16xf32, #tpu.memory_space<vmem>>, vector<1x16xf32>
    %53 = vector.broadcast %52 : vector<1x16xf32> to vector<8x16xf32>
    %54 = arith.addf %51, %53 : vector<8x16xf32>
    %c0_34 = arith.constant 0 : index
    %c0_35 = arith.constant 0 : index
    %55 = vector.load %arg13[%c0_34, %c0_35] : memref<8x16xf32, #tpu.memory_space<vmem>>, vector<8x16xf32>
    %56 = arith.mulf %47, %54 : vector<8x16xf32>
    %57 = arith.addf %55, %56 : vector<8x16xf32>
    %c0_36 = arith.constant 0 : index
    %c0_37 = arith.constant 0 : index
    %58 = vector.load %arg13[%c0_36, %c0_37] : memref<8x16xf32, #tpu.memory_space<vmem>>, vector<8x16xf32>
    tpu.vector_store %arg13[%c0_36, %c0_37], %57 {strides = array<i32>} : memref<8x16xf32, #tpu.memory_space<vmem>>, vector<8x16xf32>,
    %59 = vector.extract_strided_slice %16 {offsets = [0, 16], sizes = [8, 16], strides = [1, 1]} : vector<8x48xf32> to vector<8x16xf32>
    %cst_38 = arith.constant dense<0.000000e+00> : vector<8xf32>
    %60 = vector.multi_reduction <add>, %59, %cst_38 [1] : vector<8x16xf32> to vector<8xf32>
    %61 = vector.shape_cast %60 : vector<8xf32> to vector<8x1xf32>
    %cst_39 = arith.constant 1.600000e+01 : f32
    %62 = vector.broadcast %cst_39 : f32 to vector<8x1xf32>
    %63 = arith.divf %61, %62 : vector<8x1xf32>
    %64 = arith.mulf %59, %59 : vector<8x16xf32>
    %cst_40 = arith.constant dense<0.000000e+00> : vector<8xf32>
    %65 = vector.multi_reduction <add>, %64, %cst_40 [1] : vector<8x16xf32> to vector<8xf32>
    %66 = vector.shape_cast %65 : vector<8xf32> to vector<8x1xf32>
    %cst_41 = arith.constant 1.600000e+01 : f32
    %67 = vector.broadcast %cst_41 : f32 to vector<8x1xf32>
    %68 = arith.divf %66, %67 : vector<8x1xf32>
    %69 = arith.mulf %63, %63 : vector<8x1xf32>
    %70 = arith.subf %68, %69 : vector<8x1xf32>
    %71 = vector.broadcast %63 : vector<8x1xf32> to vector<8x16xf32>
    %72 = arith.subf %59, %71 : vector<8x16xf32>
    %cst_42 = arith.constant 9.99999974E-6 : f32
    %73 = vector.broadcast %cst_42 : f32 to vector<8x1xf32>
    %74 = arith.addf %70, %73 : vector<8x1xf32>
    %75 = math.rsqrt %74 : vector<8x1xf32>
    %76 = vector.broadcast %75 : vector<8x1xf32> to vector<8x16xf32>
    %77 = arith.mulf %72, %76 : vector<8x16xf32>
    %c0_43 = arith.constant 0 : index
    %c16 = arith.constant 16 : index
    %78 = vector.load %arg10[%c0_43, %c16] : memref<1x48xf32, #tpu.memory_space<vmem>>, vector<1x16xf32>
    %79 = vector.broadcast %78 : vector<1x16xf32> to vector<8x16xf32>
    %80 = arith.mulf %77, %79 : vector<8x16xf32>
    %c0_44 = arith.constant 0 : index
    %c16_45 = arith.constant 16 : index
    %81 = vector.load %arg11[%c0_44, %c16_45] : memref<1x48xf32, #tpu.memory_space<vmem>>, vector<1x16xf32>
    %82 = vector.broadcast %81 : vector<1x16xf32> to vector<8x16xf32>
    %83 = arith.addf %80, %82 : vector<8x16xf32>
    %cst_46 = arith.constant 0.000000e+00 : f32
    %84 = vector.broadcast %cst_46 : f32 to vector<8x16xf32>
    %85 = arith.subf %84, %83 : vector<8x16xf32>
    %86 = math.exp %85 : vector<8x16xf32>
    %cst_47 = arith.constant 1.000000e+00 : f32
    %87 = vector.broadcast %cst_47 : f32 to vector<8x16xf32>
    %88 = arith.addf %87, %86 : vector<8x16xf32>
    %89 = tpu.reciprocal %88 {approx = true} : vector<8x16xf32> -> vector<8x16xf32>
    %90 = vector.extract_strided_slice %11 {offsets = [0, 4], sizes = [8, 4], strides = [1, 1]} : vector<8x12xf32> to vector<8x4xf32>
    %c1 = arith.constant 1 : index
    %c0_48 = arith.constant 0 : index
    %c0_49 = arith.constant 0 : index
    %91 = vector.load %arg7[%c1, %c0_48, %c0_49] : memref<3x4x16xf32, #tpu.memory_space<vmem>>, vector<1x4x16xf32>
    %92 = vector.shape_cast %91 : vector<1x4x16xf32> to vector<4x16xf32>
    %cst_50 = arith.constant dense<0.000000e+00> : vector<8x16xf32>
    %93 = tpu.matmul %90, %92, %cst_50 {dimension_numbers = #tpu.dot_dimension_numbers<[1], [0], [0], [1], [0, 0, 1, 1], [], []>} : vector<8x4xf32>, vector<4x16xf32>, vector<8x16xf32> -> vector<8x16xf32>
    %c0_51 = arith.constant 0 : index
    %c0_52 = arith.constant 0 : index
    %94 = vector.load %arg5[%c0_51, %c0_52] : memref<1x16xf32, #tpu.memory_space<vmem>>, vector<1x16xf32>
    %95 = vector.broadcast %94 : vector<1x16xf32> to vector<8x16xf32>
    %96 = arith.addf %93, %95 : vector<8x16xf32>
    %c0_53 = arith.constant 0 : index
    %c0_54 = arith.constant 0 : index
    %97 = vector.load %arg13[%c0_53, %c0_54] : memref<8x16xf32, #tpu.memory_space<vmem>>, vector<8x16xf32>
    %98 = arith.mulf %89, %96 : vector<8x16xf32>
    %99 = arith.addf %97, %98 : vector<8x16xf32>
    %c0_55 = arith.constant 0 : index
    %c0_56 = arith.constant 0 : index
    %100 = vector.load %arg13[%c0_55, %c0_56] : memref<8x16xf32, #tpu.memory_space<vmem>>, vector<8x16xf32>
    tpu.vector_store %arg13[%c0_55, %c0_56], %99 {strides = array<i32>} : memref<8x16xf32, #tpu.memory_space<vmem>>, vector<8x16xf32>,
    %101 = vector.extract_strided_slice %16 {offsets = [0, 32], sizes = [8, 16], strides = [1, 1]} : vector<8x48xf32> to vector<8x16xf32>
    %cst_57 = arith.constant dense<0.000000e+00> : vector<8xf32>
    %102 = vector.multi_reduction <add>, %101, %cst_57 [1] : vector<8x16xf32> to vector<8xf32>
    %103 = vector.shape_cast %102 : vector<8xf32> to vector<8x1xf32>
    %cst_58 = arith.constant 1.600000e+01 : f32
    %104 = vector.broadcast %cst_58 : f32 to vector<8x1xf32>
    %105 = arith.divf %103, %104 : vector<8x1xf32>
    %106 = arith.mulf %101, %101 : vector<8x16xf32>
    %cst_59 = arith.constant dense<0.000000e+00> : vector<8xf32>
    %107 = vector.multi_reduction <add>, %106, %cst_59 [1] : vector<8x16xf32> to vector<8xf32>
    %108 = vector.shape_cast %107 : vector<8xf32> to vector<8x1xf32>
    %cst_60 = arith.constant 1.600000e+01 : f32
    %109 = vector.broadcast %cst_60 : f32 to vector<8x1xf32>
    %110 = arith.divf %108, %109 : vector<8x1xf32>
    %111 = arith.mulf %105, %105 : vector<8x1xf32>
    %112 = arith.subf %110, %111 : vector<8x1xf32>
    %113 = vector.broadcast %105 : vector<8x1xf32> to vector<8x16xf32>
    %114 = arith.subf %101, %113 : vector<8x16xf32>
    %cst_61 = arith.constant 9.99999974E-6 : f32
    %115 = vector.broadcast %cst_61 : f32 to vector<8x1xf32>
    %116 = arith.addf %112, %115 : vector<8x1xf32>
    %117 = math.rsqrt %116 : vector<8x1xf32>
    %118 = vector.broadcast %117 : vector<8x1xf32> to vector<8x16xf32>
    %119 = arith.mulf %114, %118 : vector<8x16xf32>
    %c0_62 = arith.constant 0 : index
    %c32 = arith.constant 32 : index
    %120 = vector.load %arg10[%c0_62, %c32] : memref<1x48xf32, #tpu.memory_space<vmem>>, vector<1x16xf32>
    %121 = vector.broadcast %120 : vector<1x16xf32> to vector<8x16xf32>
    %122 = arith.mulf %119, %121 : vector<8x16xf32>
    %c0_63 = arith.constant 0 : index
    %c32_64 = arith.constant 32 : index
    %123 = vector.load %arg11[%c0_63, %c32_64] : memref<1x48xf32, #tpu.memory_space<vmem>>, vector<1x16xf32>
    %124 = vector.broadcast %123 : vector<1x16xf32> to vector<8x16xf32>
    %125 = arith.addf %122, %124 : vector<8x16xf32>
    %cst_65 = arith.constant 0.000000e+00 : f32
    %126 = vector.broadcast %cst_65 : f32 to vector<8x16xf32>
    %127 = arith.subf %126, %125 : vector<8x16xf32>
    %128 = math.exp %127 : vector<8x16xf32>
    %cst_66 = arith.constant 1.000000e+00 : f32
    %129 = vector.broadcast %cst_66 : f32 to vector<8x16xf32>
    %130 = arith.addf %129, %128 : vector<8x16xf32>
    %131 = tpu.reciprocal %130 {approx = true} : vector<8x16xf32> -> vector<8x16xf32>
    %132 = vector.extract_strided_slice %11 {offsets = [0, 8], sizes = [8, 4], strides = [1, 1]} : vector<8x12xf32> to vector<8x4xf32>
    %c2 = arith.constant 2 : index
    %c0_67 = arith.constant 0 : index
    %c0_68 = arith.constant 0 : index
    %133 = vector.load %arg7[%c2, %c0_67, %c0_68] : memref<3x4x16xf32, #tpu.memory_space<vmem>>, vector<1x4x16xf32>
    %134 = vector.shape_cast %133 : vector<1x4x16xf32> to vector<4x16xf32>
    %cst_69 = arith.constant dense<0.000000e+00> : vector<8x16xf32>
    %135 = tpu.matmul %132, %134, %cst_69 {dimension_numbers = #tpu.dot_dimension_numbers<[1], [0], [0], [1], [0, 0, 1, 1], [], []>} : vector<8x4xf32>, vector<4x16xf32>, vector<8x16xf32> -> vector<8x16xf32>
    %c0_70 = arith.constant 0 : index
    %c0_71 = arith.constant 0 : index
    %136 = vector.load %arg5[%c0_70, %c0_71] : memref<1x16xf32, #tpu.memory_space<vmem>>, vector<1x16xf32>
    %137 = vector.broadcast %136 : vector<1x16xf32> to vector<8x16xf32>
    %138 = arith.addf %135, %137 : vector<8x16xf32>
    %c0_72 = arith.constant 0 : index
    %c0_73 = arith.constant 0 : index
    %139 = vector.load %arg13[%c0_72, %c0_73] : memref<8x16xf32, #tpu.memory_space<vmem>>, vector<8x16xf32>
    %140 = arith.mulf %131, %138 : vector<8x16xf32>
    %141 = arith.addf %139, %140 : vector<8x16xf32>
    %c0_74 = arith.constant 0 : index
    %c0_75 = arith.constant 0 : index
    %142 = vector.load %arg13[%c0_74, %c0_75] : memref<8x16xf32, #tpu.memory_space<vmem>>, vector<8x16xf32>
    tpu.vector_store %arg13[%c0_74, %c0_75], %141 {strides = array<i32>} : memref<8x16xf32, #tpu.memory_space<vmem>>, vector<8x16xf32>,
    %c0_76 = arith.constant 0 : index
    %c0_77 = arith.constant 0 : index
    %143 = vector.load %arg13[%c0_76, %c0_77] : memref<8x16xf32, #tpu.memory_space<vmem>>, vector<8x16xf32>
    %c0_78 = arith.constant 0 : index
    %c0_79 = arith.constant 0 : index
    %144 = vector.load %arg12[%c0_78, %c0_79] : memref<8x16xf32, #tpu.memory_space<vmem>>, vector<8x16xf32>
    tpu.vector_store %arg12[%c0_78, %c0_79], %143 {strides = array<i32>} : memref<8x16xf32, #tpu.memory_space<vmem>>, vector<8x16xf32>,
    return
  }
  func.func @transform_0(%arg0: i32) -> (i32, i32) {
    %c0_i32 = arith.constant 0 : i32
    %c0_i32_0 = arith.constant 0 : i32
    return %arg0, %c0_i32 : i32, i32
  }
  func.func @transform_1(%arg0: i32) -> (i32, i32) {
    %c0_i32 = arith.constant 0 : i32
    %c0_i32_0 = arith.constant 0 : i32
    return %arg0, %c0_i32 : i32, i32
  }
  func.func @transform_2(%arg0: i32) -> (i32, i32) {
    %c0_i32 = arith.constant 0 : i32
    %c0_i32_0 = arith.constant 0 : i32
    %c0_i32_1 = arith.constant 0 : i32
    return %c0_i32, %c0_i32_0 : i32, i32
  }
  func.func @transform_3(%arg0: i32) -> (i32, i32) {
    %c0_i32 = arith.constant 0 : i32
    %c0_i32_0 = arith.constant 0 : i32
    %c0_i32_1 = arith.constant 0 : i32
    return %c0_i32, %c0_i32_0 : i32, i32
  }
  func.func @transform_4(%arg0: i32) -> (i32, i32) {
    %c0_i32 = arith.constant 0 : i32
    %c0_i32_0 = arith.constant 0 : i32
    %c0_i32_1 = arith.constant 0 : i32
    return %c0_i32, %c0_i32_0 : i32, i32
  }
  func.func @transform_5(%arg0: i32) -> (i32, i32) {
    %c0_i32 = arith.constant 0 : i32
    %c0_i32_0 = arith.constant 0 : i32
    %c0_i32_1 = arith.constant 0 : i32
    return %c0_i32, %c0_i32_0 : i32, i32
  }
  func.func @transform_6(%arg0: i32) -> (i32, i32, i32) {
    %c0_i32 = arith.constant 0 : i32
    %c0_i32_0 = arith.constant 0 : i32
    %c0_i32_1 = arith.constant 0 : i32
    %c0_i32_2 = arith.constant 0 : i32
    return %c0_i32, %c0_i32_0, %c0_i32_1 : i32, i32, i32
  }
  func.func @transform_7(%arg0: i32) -> (i32, i32) {
    %c0_i32 = arith.constant 0 : i32
    %c0_i32_0 = arith.constant 0 : i32
    %c0_i32_1 = arith.constant 0 : i32
    return %c0_i32, %c0_i32_0 : i32, i32
  }
  func.func @transform_8(%arg0: i32) -> (i32, i32) {
    %c0_i32 = arith.constant 0 : i32
    %c0_i32_0 = arith.constant 0 : i32
    %c0_i32_1 = arith.constant 0 : i32
    return %c0_i32, %c0_i32_0 : i32, i32
  }
  func.func @transform_9(%arg0: i32) -> (i32, i32) {
    %c0_i32 = arith.constant 0 : i32
    %c0_i32_0 = arith.constant 0 : i32
    %c0_i32_1 = arith.constant 0 : i32
    return %c0_i32, %c0_i32_0 : i32, i32
  }
  func.func @transform_10(%arg0: i32) -> (i32, i32) {
    %c0_i32 = arith.constant 0 : i32
    %c0_i32_0 = arith.constant 0 : i32
    %c0_i32_1 = arith.constant 0 : i32
    return %c0_i32, %c0_i32_0 : i32, i32
  }
  func.func @transform_11(%arg0: i32) -> (i32, i32) {
    %c0_i32 = arith.constant 0 : i32
    %c0_i32_0 = arith.constant 0 : i32
    return %arg0, %c0_i32 : i32, i32
  }
}

</mosaic_0001>

<llo_original>
// kernel: mlora_linear_forward.1
$region0: #{mlora_linear_forward.1}
  #allocation0 [shape = 'u32[]', space=smem, size = 0x4, offset = 0x4, fixed_abs, tag = 'smem constant byte address 0x4 - core index']
  #allocation1 [shape = 'u32[144,128]{1,0:T(1,128)}', space=vmem, size = 0x12000, scoped, tag = 'internal scratch']
  #allocation2 [shape = 'f32[8,16]{1,0:T(8,128)}', space=vmem, size = 0x1000, scoped, tag = 'scratch operand']
  %s0 = inlined_call_operand.vmem [shape: f32[8,32], index: 0, kind: input, shape index: {}]
  %s1 = inlined_call_operand.vmem [shape: f32[8,768], index: 1, kind: input, shape index: {}]
  %s2 = inlined_call_operand.vmem [shape: bf16[32,16], index: 2, kind: input, shape index: {}]
  %s3 = inlined_call_operand.vmem [shape: f32[1,16], index: 3, kind: input, shape index: {}]
  %s4 = inlined_call_operand.vmem [shape: f32[1,16], index: 4, kind: input, shape index: {}]
  %s5 = inlined_call_operand.vmem [shape: bf16[32,12], index: 5, kind: input, shape index: {}]
  %s6 = inlined_call_operand.vmem [shape: f32[3,4,16], index: 6, kind: input, shape index: {}]
  %s7 = inlined_call_operand.vmem [shape: bf16[768,48], index: 7, kind: input, shape index: {}]
  %s8 = inlined_call_operand.vmem [shape: f32[1,48], index: 8, kind: input, shape index: {}]
  %s9 = inlined_call_operand.vmem [shape: f32[1,48], index: 9, kind: input, shape index: {}]
  %s10 = inlined_call_operand.vmem [shape: f32[1,48], index: 10, kind: input, shape index: {}]
  %s11 = inlined_call_operand.hbm [shape: f32[8,16], index: 11, kind: output, shape index: {}]
  %s12 = sld [smem:[#allocation0]]
  $region54: #{mlora_linear_forward.1} parent=0
    _
  %s14 = ssub.s32 1, %s12
  %s15 = scalar_select 0, %s14, %s12
  $region1: #{mlora_linear_forward.1} parent=0
    #allocation3 [shape = 'u8[4096]{0}', space=vmem, size = 0x1000, scoped, tag = 'output window, operand 0, single buffered']
    #allocation4 [shape = 's32[1]{0}', space=sflag, size = 0x4, scoped, tag = 'scoped memory for mlora_linear_forward.1']
    %16 = vsyncpa [#allocation4], 0
    // Predicated region
    $region2: #{mlora_linear_forward.1} parent=1 // pred_check
      _
    $region3: #{mlora_linear_forward.1} parent=1 // pred_check_branch
      %18 = sbr.rel (0) target = $region5
    $region4: #{mlora_linear_forward.1} parent=1 // pred_region
      _
    $region5: #{mlora_linear_forward.1} parent=1 // pred_fallthru
      _
    // Predicated region
    $region6: #{mlora_linear_forward.1} parent=1 // pred_check
      _
    $region7: #{mlora_linear_forward.1} parent=1 // pred_check_branch
      %20 = sbr.rel (0) target = $region9
    $region8: #{mlora_linear_forward.1} parent=1 // pred_region
      _
    $region9: #{mlora_linear_forward.1} parent=1 // pred_fallthru
      _
    // Predicated region
    $region10: #{mlora_linear_forward.1} parent=1 // pred_check
      _
    $region11: #{mlora_linear_forward.1} parent=1 // pred_check_branch
      %22 = sbr.rel (0) target = $region13
    $region12: #{mlora_linear_forward.1} parent=1 // pred_region
      _
    $region13: #{mlora_linear_forward.1} parent=1 // pred_fallthru
      _
    // Predicated region
    $region14: #{mlora_linear_forward.1} parent=1 // pred_check
      _
    $region15: #{mlora_linear_forward.1} parent=1 // pred_check_branch
      %24 = sbr.rel (0) target = $region17
    $region16: #{mlora_linear_forward.1} parent=1 // pred_region
      _
    $region17: #{mlora_linear_forward.1} parent=1 // pred_fallthru
      _
    // Predicated region
    $region18: #{mlora_linear_forward.1} parent=1 // pred_check
      _
    $region19: #{mlora_linear_forward.1} parent=1 // pred_check_branch
      %26 = sbr.rel (0) target = $region21
    $region20: #{mlora_linear_forward.1} parent=1 // pred_region
      _
    $region21: #{mlora_linear_forward.1} parent=1 // pred_fallthru
      _
    // Predicated region
    $region22: #{mlora_linear_forward.1} parent=1 // pred_check
      _
    $region23: #{mlora_linear_forward.1} parent=1 // pred_check_branch
      %28 = sbr.rel (0) target = $region25
    $region24: #{mlora_linear_forward.1} parent=1 // pred_region
      _
    $region25: #{mlora_linear_forward.1} parent=1 // pred_fallthru
      _
    // Predicated region
    $region26: #{mlora_linear_forward.1} parent=1 // pred_check
      _
    $region27: #{mlora_linear_forward.1} parent=1 // pred_check_branch
      %30 = sbr.rel (0) target = $region29
    $region28: #{mlora_linear_forward.1} parent=1 // pred_region
      _
    $region29: #{mlora_linear_forward.1} parent=1 // pred_fallthru
      _
    // Predicated region
    $region30: #{mlora_linear_forward.1} parent=1 // pred_check
      _
    $region31: #{mlora_linear_forward.1} parent=1 // pred_check_branch
      %32 = sbr.rel (0) target = $region33
    $region32: #{mlora_linear_forward.1} parent=1 // pred_region
      _
    $region33: #{mlora_linear_forward.1} parent=1 // pred_fallthru
      _
    // Predicated region
    $region34: #{mlora_linear_forward.1} parent=1 // pred_check
      _
    $region35: #{mlora_linear_forward.1} parent=1 // pred_check_branch
      %34 = sbr.rel (0) target = $region37
    $region36: #{mlora_linear_forward.1} parent=1 // pred_region
      _
    $region37: #{mlora_linear_forward.1} parent=1 // pred_fallthru
      _
    // Predicated region
    $region38: #{mlora_linear_forward.1} parent=1 // pred_check
      _
    $region39: #{mlora_linear_forward.1} parent=1 // pred_check_branch
      %36 = sbr.rel (0) target = $region41
    $region40: #{mlora_linear_forward.1} parent=1 // pred_region
      _
    $region41: #{mlora_linear_forward.1} parent=1 // pred_fallthru
      _
    // Predicated region
    $region42: #{mlora_linear_forward.1} parent=1 // pred_check
      _
    $region43: #{mlora_linear_forward.1} parent=1 // pred_check_branch
      %38 = sbr.rel (0) target = $region45
    $region44: #{mlora_linear_forward.1} parent=1 // pred_region
      _
    $region45: #{mlora_linear_forward.1} parent=1 // pred_fallthru
      _
    %v40 = vld [vmem:[%s0] sm:$0xff]
    %v41 = vpack.c.bf16 %v40, %v40
    %v42 = vld [vmem:[%s1] sm:$0xff]
    %v43 = vld [vmem:[%s1 + $0x8] sm:$0xff]
    %v44 = vld [vmem:[%s1 + $0x10] sm:$0xff]
    %v45 = vld [vmem:[%s1 + $0x18] sm:$0xff]
    %v46 = vld [vmem:[%s1 + $0x20] sm:$0xff]
    %v47 = vld [vmem:[%s1 + $0x28] sm:$0xff]
    %v48 = vpack.c.bf16 %v42, %v42
    %v49 = vpack.c.bf16 %v43, %v43
    %v50 = vpack.c.bf16 %v44, %v44
    %v51 = vpack.c.bf16 %v45, %v45
    %v52 = vpack.c.bf16 %v46, %v46
    %v53 = vpack.c.bf16 %v47, %v47
    %v54 = vld [vmem:[%s2] sm:$0xf]
    %v55 = vld [vmem:[%s2 + $0x4] sm:$0xf]
    %v56 = vld [vmem:[%s2 + $0x8] sm:$0xf]
    %v57 = vld [vmem:[%s2 + $0xc] sm:$0xf]
    %v58 = vld [vmem:[%s3] sm:$0x1]
    %v60 = vlaneseq
    %v61 = vshrl.u32 %v60, 7
    %v62 = vsub.s32 0, %v61
    %v63 = vrot.slane %v58, %v62
    %v69 = vunpack.c.l.b16 %v54
    %v70 = vunpack.c.l.b16 %v55
    %v71 = vunpack.c.l.b16 %v56
    %v72 = vunpack.c.l.b16 %v57
    %v73 = vpack.c.b16 %v70, %v69
    %v74 = vpack.c.b16 %v72, %v71
    %vm77 = vcmask 261120
    %v79 = vsel %vm77, %v41, 0
    %81 = vmatprep.subr.bf16.mxu0 0
    %82 = vmatpush1.bf16.msra.mxu0 0
    %83 = vmatprep.subr.bf16.mxu0 0
    %84 = vmatpush1.bf16.msra.mxu0 0
    %85 = vmatprep.subr.bf16.mxu0 0
    %86 = vmatpush1.bf16.msra.mxu0 0
    %87 = vmatprep.subr.bf16.mxu0 0
    %88 = vmatpush1.bf16.msra.mxu0 0
    %89 = vmatprep.subr.bf16.mxu0 0
    %90 = vmatpush1.bf16.msra.mxu0 0
    %91 = vmatprep.subr.bf16.mxu0 0
    %92 = vmatpush1.bf16.msra.mxu0 0
    %93 = vmatprep.subr.bf16.mxu0 0
    %94 = vmatpush1.bf16.msra.mxu0 %v74
    %95 = vmatprep.subr.bf16.mxu0 0
    %96 = vmatpush1.bf16.msra.mxu0 %v73
    %97 = vmatprep.subr.bf16.mxu0 0
    %98 = vmatpush2.bf16.msra.mxu0 0
    %99 = vmatprep.subr.bf16.mxu0 0
    %100 = vmatpush2.bf16.msra.mxu0 0
    %101 = vmatprep.subr.bf16.mxu0 0
    %102 = vmatpush2.bf16.msra.mxu0 0
    %103 = vmatprep.subr.bf16.mxu0 0
    %104 = vmatpush2.bf16.msra.mxu0 0
    %105 = vmatprep.subr.bf16.mxu0 0
    %106 = vmatpush2.bf16.msra.mxu0 0
    %107 = vmatprep.subr.bf16.mxu0 0
    %108 = vmatpush2.bf16.msra.mxu0 0
    %109 = vmatprep.subr.bf16.mxu0 0
    %110 = vmatpush2.bf16.msra.mxu0 0
    %111 = vmatprep.subr.bf16.mxu0 0
    %112 = vmatpush2.bf16.msra.mxu0 0
    %113 = vmatprep.mubr.bf16.mxu0 0
    %114 = vmatmul.mubr.bf16.gmra.mxu0 %v79
    %v115 = vpop.f32.mrf.mxu0
    %v116 = vadd.f32 %v63, %v115
    %v117 = vpop.f32.mrf.mxu0
    %v118 = vpop.f32.mrf.mxu0
    %v119 = vpop.f32.mrf.mxu0
    %120 = vdwg.mxu0
    %vm121 = vcmask 130048
    %122 = vst.msk [vmem:[#allocation2] sm:$0xff] %vm121, %v116
    %v123 = vld [vmem:[%s5] sm:$0xf]
    %v124 = vld [vmem:[%s5 + $0x4] sm:$0xf]
    %v125 = vld [vmem:[%s5 + $0x8] sm:$0xf]
    %v126 = vld [vmem:[%s5 + $0xc] sm:$0xf]
    %v131 = vunpack.c.l.b16 %v123
    %v132 = vunpack.c.l.b16 %v124
    %v133 = vunpack.c.l.b16 %v125
    %v134 = vunpack.c.l.b16 %v126
    %v135 = vpack.c.b16 %v132, %v131
    %v136 = vpack.c.b16 %v134, %v133
    %139 = vmatprep.subr.bf16.mxu0 0
    %140 = vmatpush1.bf16.msra.mxu0 0
    %141 = vmatprep.subr.bf16.mxu0 0
    %142 = vmatpush1.bf16.msra.mxu0 0
    %143 = vmatprep.subr.bf16.mxu0 0
    %144 = vmatpush1.bf16.msra.mxu0 0
    %145 = vmatprep.subr.bf16.mxu0 0
    %146 = vmatpush1.bf16.msra.mxu0 0
    %147 = vmatprep.subr.bf16.mxu0 0
    %148 = vmatpush1.bf16.msra.mxu0 0
    %149 = vmatprep.subr.bf16.mxu0 0
    %150 = vmatpush1.bf16.msra.mxu0 0
    %151 = vmatprep.subr.bf16.mxu0 0
    %152 = vmatpush1.bf16.msra.mxu0 %v136
    %153 = vmatprep.subr.bf16.mxu0 0
    %154 = vmatpush1.bf16.msra.mxu0 %v135
    %155 = vmatprep.subr.bf16.mxu0 0
    %156 = vmatpush2.bf16.msra.mxu0 0
    %157 = vmatprep.subr.bf16.mxu0 0
    %158 = vmatpush2.bf16.msra.mxu0 0
    %159 = vmatprep.subr.bf16.mxu0 0
    %160 = vmatpush2.bf16.msra.mxu0 0
    %161 = vmatprep.subr.bf16.mxu0 0
    %162 = vmatpush2.bf16.msra.mxu0 0
    %163 = vmatprep.subr.bf16.mxu0 0
    %164 = vmatpush2.bf16.msra.mxu0 0
    %165 = vmatprep.subr.bf16.mxu0 0
    %166 = vmatpush2.bf16.msra.mxu0 0
    %167 = vmatprep.subr.bf16.mxu0 0
    %168 = vmatpush2.bf16.msra.mxu0 0
    %169 = vmatprep.subr.bf16.mxu0 0
    %170 = vmatpush2.bf16.msra.mxu0 0
    %171 = vmatprep.mubr.bf16.mxu0 0
    %172 = vmatmul.mubr.bf16.gmra.mxu0 %v79
    %v173 = vpop.f32.mrf.mxu0
    %v174 = vadd.f32 0.0, %v173
    %v175 = vpop.f32.mrf.mxu0
    %v176 = vpop.f32.mrf.mxu0
    %v177 = vpop.f32.mrf.mxu0
    %178 = vdwg.mxu0
    %v179 = vld [vmem:[%s7] sm:$0xf]
    %v180 = vld [vmem:[%s7 + $0x4] sm:$0xf]
    %v181 = vld [vmem:[%s7 + $0x8] sm:$0xf]
    %v182 = vld [vmem:[%s7 + $0xc] sm:$0xf]
    %v183 = vld [vmem:[%s7 + $0x10] sm:$0xf]
    %v184 = vld [vmem:[%s7 + $0x14] sm:$0xf]
    %v185 = vld [vmem:[%s7 + $0x18] sm:$0xf]
    %v186 = vld [vmem:[%s7 + $0x1c] sm:$0xf]
    %v187 = vld [vmem:[%s7 + $0x20] sm:$0xf]
    %v188 = vld [vmem:[%s7 + $0x24] sm:$0xf]
    %v189 = vld [vmem:[%s7 + $0x28] sm:$0xf]
    %v190 = vld [vmem:[%s7 + $0x2c] sm:$0xf]
    %v191 = vld [vmem:[%s7 + $0x30] sm:$0xf]
    %v192 = vld [vmem:[%s7 + $0x34] sm:$0xf]
    %v193 = vld [vmem:[%s7 + $0x38] sm:$0xf]
    %v194 = vld [vmem:[%s7 + $0x3c] sm:$0xf]
    %v195 = vld [vmem:[%s7 + $0x40] sm:$0xf]
    %v196 = vld [vmem:[%s7 + $0x44] sm:$0xf]
    %v197 = vld [vmem:[%s7 + $0x48] sm:$0xf]
    %v198 = vld [vmem:[%s7 + $0x4c] sm:$0xf]
    %v199 = vld [vmem:[%s7 + $0x50] sm:$0xf]
    %v200 = vld [vmem:[%s7 + $0x54] sm:$0xf]
    %v201 = vld [vmem:[%s7 + $0x58] sm:$0xf]
    %v202 = vld [vmem:[%s7 + $0x5c] sm:$0xf]
    %v203 = vld [vmem:[%s7 + $0x60] sm:$0xf]
    %v204 = vld [vmem:[%s7 + $0x64] sm:$0xf]
    %v205 = vld [vmem:[%s7 + $0x68] sm:$0xf]
    %v206 = vld [vmem:[%s7 + $0x6c] sm:$0xf]
    %v207 = vld [vmem:[%s7 + $0x70] sm:$0xf]
    %v208 = vld [vmem:[%s7 + $0x74] sm:$0xf]
    %v209 = vld [vmem:[%s7 + $0x78] sm:$0xf]
    %v210 = vld [vmem:[%s7 + $0x7c] sm:$0xf]
    %v211 = vld [vmem:[%s7 + $0x80] sm:$0xf]
    %v212 = vld [vmem:[%s7 + $0x84] sm:$0xf]
    %v213 = vld [vmem:[%s7 + $0x88] sm:$0xf]
    %v214 = vld [vmem:[%s7 + $0x8c] sm:$0xf]
    %v215 = vld [vmem:[%s7 + $0x90] sm:$0xf]
    %v216 = vld [vmem:[%s7 + $0x94] sm:$0xf]
    %v217 = vld [vmem:[%s7 + $0x98] sm:$0xf]
    %v218 = vld [vmem:[%s7 + $0x9c] sm:$0xf]
    %v219 = vld [vmem:[%s7 + $0xa0] sm:$0xf]
    %v220 = vld [vmem:[%s7 + $0xa4] sm:$0xf]
    %v221 = vld [vmem:[%s7 + $0xa8] sm:$0xf]
    %v222 = vld [vmem:[%s7 + $0xac] sm:$0xf]
    %v223 = vld [vmem:[%s7 + $0xb0] sm:$0xf]
    %v224 = vld [vmem:[%s7 + $0xb4] sm:$0xf]
    %v225 = vld [vmem:[%s7 + $0xb8] sm:$0xf]
    %v226 = vld [vmem:[%s7 + $0xbc] sm:$0xf]
    %v227 = vld [vmem:[%s7 + $0xc0] sm:$0xf]
    %v228 = vld [vmem:[%s7 + $0xc4] sm:$0xf]
    %v229 = vld [vmem:[%s7 + $0xc8] sm:$0xf]
    %v230 = vld [vmem:[%s7 + $0xcc] sm:$0xf]
    %v231 = vld [vmem:[%s7 + $0xd0] sm:$0xf]
    %v232 = vld [vmem:[%s7 + $0xd4] sm:$0xf]
    %v233 = vld [vmem:[%s7 + $0xd8] sm:$0xf]
    %v234 = vld [vmem:[%s7 + $0xdc] sm:$0xf]
    %v235 = vld [vmem:[%s7 + $0xe0] sm:$0xf]
    %v236 = vld [vmem:[%s7 + $0xe4] sm:$0xf]
    %v237 = vld [vmem:[%s7 + $0xe8] sm:$0xf]
    %v238 = vld [vmem:[%s7 + $0xec] sm:$0xf]
    %v239 = vld [vmem:[%s7 + $0xf0] sm:$0xf]
    %v240 = vld [vmem:[%s7 + $0xf4] sm:$0xf]
    %v241 = vld [vmem:[%s7 + $0xf8] sm:$0xf]
    %v242 = vld [vmem:[%s7 + $0xfc] sm:$0xf]
    %v243 = vld [vmem:[%s7 + $0x100] sm:$0xf]
    %v244 = vld [vmem:[%s7 + $0x104] sm:$0xf]
    %v245 = vld [vmem:[%s7 + $0x108] sm:$0xf]
    %v246 = vld [vmem:[%s7 + $0x10c] sm:$0xf]
    %v247 = vld [vmem:[%s7 + $0x110] sm:$0xf]
    %v248 = vld [vmem:[%s7 + $0x114] sm:$0xf]
    %v249 = vld [vmem:[%s7 + $0x118] sm:$0xf]
    %v250 = vld [vmem:[%s7 + $0x11c] sm:$0xf]
    %v251 = vld [vmem:[%s7 + $0x120] sm:$0xf]
    %v252 = vld [vmem:[%s7 + $0x124] sm:$0xf]
    %v253 = vld [vmem:[%s7 + $0x128] sm:$0xf]
    %v254 = vld [vmem:[%s7 + $0x12c] sm:$0xf]
    %v255 = vld [vmem:[%s7 + $0x130] sm:$0xf]
    %v256 = vld [vmem:[%s7 + $0x134] sm:$0xf]
    %v257 = vld [vmem:[%s7 + $0x138] sm:$0xf]
    %v258 = vld [vmem:[%s7 + $0x13c] sm:$0xf]
    %v259 = vld [vmem:[%s7 + $0x140] sm:$0xf]
    %v260 = vld [vmem:[%s7 + $0x144] sm:$0xf]
    %v261 = vld [vmem:[%s7 + $0x148] sm:$0xf]
    %v262 = vld [vmem:[%s7 + $0x14c] sm:$0xf]
    %v263 = vld [vmem:[%s7 + $0x150] sm:$0xf]
    %v264 = vld [vmem:[%s7 + $0x154] sm:$0xf]
    %v265 = vld [vmem:[%s7 + $0x158] sm:$0xf]
    %v266 = vld [vmem:[%s7 + $0x15c] sm:$0xf]
    %v267 = vld [vmem:[%s7 + $0x160] sm:$0xf]
    %v268 = vld [vmem:[%s7 + $0x164] sm:$0xf]
    %v269 = vld [vmem:[%s7 + $0x168] sm:$0xf]
    %v270 = vld [vmem:[%s7 + $0x16c] sm:$0xf]
    %v271 = vld [vmem:[%s7 + $0x170] sm:$0xf]
    %v272 = vld [vmem:[%s7 + $0x174] sm:$0xf]
    %v273 = vld [vmem:[%s7 + $0x178] sm:$0xf]
    %v274 = vld [vmem:[%s7 + $0x17c] sm:$0xf]
    %v275 = vld [vmem:[%s8] sm:$0x1]
    %v277 = vlaneseq
    %v278 = vshrl.u32 %v277, 7
    %v279 = vsub.s32 0, %v278
    %v280 = vrot.slane %v275, %v279
    %v378 = vunpack.c.l.b16 %v179
    %v379 = vunpack.c.l.b16 %v180
    %v380 = vunpack.c.l.b16 %v181
    %v381 = vunpack.c.l.b16 %v182
    %v382 = vunpack.c.l.b16 %v183
    %v383 = vunpack.c.l.b16 %v184
    %v384 = vunpack.c.l.b16 %v185
    %v385 = vunpack.c.l.b16 %v186
    %v386 = vunpack.c.l.b16 %v187
    %v387 = vunpack.c.l.b16 %v188
    %v388 = vunpack.c.l.b16 %v189
    %v389 = vunpack.c.l.b16 %v190
    %v390 = vunpack.c.l.b16 %v191
    %v391 = vunpack.c.l.b16 %v192
    %v392 = vunpack.c.l.b16 %v193
    %v393 = vunpack.c.l.b16 %v194
    %v394 = vunpack.c.l.b16 %v195
    %v395 = vunpack.c.l.b16 %v196
    %v396 = vunpack.c.l.b16 %v197
    %v397 = vunpack.c.l.b16 %v198
    %v398 = vunpack.c.l.b16 %v199
    %v399 = vunpack.c.l.b16 %v200
    %v400 = vunpack.c.l.b16 %v201
    %v401 = vunpack.c.l.b16 %v202
    %v402 = vunpack.c.l.b16 %v203
    %v403 = vunpack.c.l.b16 %v204
    %v404 = vunpack.c.l.b16 %v205
    %v405 = vunpack.c.l.b16 %v206
    %v406 = vunpack.c.l.b16 %v207
    %v407 = vunpack.c.l.b16 %v208
    %v408 = vunpack.c.l.b16 %v209
    %v409 = vunpack.c.l.b16 %v210
    %v410 = vunpack.c.l.b16 %v211
    %v411 = vunpack.c.l.b16 %v212
    %v412 = vunpack.c.l.b16 %v213
    %v413 = vunpack.c.l.b16 %v214
    %v414 = vunpack.c.l.b16 %v215
    %v415 = vunpack.c.l.b16 %v216
    %v416 = vunpack.c.l.b16 %v217
    %v417 = vunpack.c.l.b16 %v218
    %v418 = vunpack.c.l.b16 %v219
    %v419 = vunpack.c.l.b16 %v220
    %v420 = vunpack.c.l.b16 %v221
    %v421 = vunpack.c.l.b16 %v222
    %v422 = vunpack.c.l.b16 %v223
    %v423 = vunpack.c.l.b16 %v224
    %v424 = vunpack.c.l.b16 %v225
    %v425 = vunpack.c.l.b16 %v226
    %v426 = vunpack.c.l.b16 %v227
    %v427 = vunpack.c.l.b16 %v228
    %v428 = vunpack.c.l.b16 %v229
    %v429 = vunpack.c.l.b16 %v230
    %v430 = vunpack.c.l.b16 %v231
    %v431 = vunpack.c.l.b16 %v232
    %v432 = vunpack.c.l.b16 %v233
    %v433 = vunpack.c.l.b16 %v234
    %v434 = vunpack.c.l.b16 %v235
    %v435 = vunpack.c.l.b16 %v236
    %v436 = vunpack.c.l.b16 %v237
    %v437 = vunpack.c.l.b16 %v238
    %v438 = vunpack.c.l.b16 %v239
    %v439 = vunpack.c.l.b16 %v240
    %v440 = vunpack.c.l.b16 %v241
    %v441 = vunpack.c.l.b16 %v242
    %v442 = vunpack.c.l.b16 %v243
    %v443 = vunpack.c.l.b16 %v244
    %v444 = vunpack.c.l.b16 %v245
    %v445 = vunpack.c.l.b16 %v246
    %v446 = vunpack.c.l.b16 %v247
    %v447 = vunpack.c.l.b16 %v248
    %v448 = vunpack.c.l.b16 %v249
    %v449 = vunpack.c.l.b16 %v250
    %v450 = vunpack.c.l.b16 %v251
    %v451 = vunpack.c.l.b16 %v252
    %v452 = vunpack.c.l.b16 %v253
    %v453 = vunpack.c.l.b16 %v254
    %v454 = vunpack.c.l.b16 %v255
    %v455 = vunpack.c.l.b16 %v256
    %v456 = vunpack.c.l.b16 %v257
    %v457 = vunpack.c.l.b16 %v258
    %v458 = vunpack.c.l.b16 %v259
    %v459 = vunpack.c.l.b16 %v260
    %v460 = vunpack.c.l.b16 %v261
    %v461 = vunpack.c.l.b16 %v262
    %v462 = vunpack.c.l.b16 %v263
    %v463 = vunpack.c.l.b16 %v264
    %v464 = vunpack.c.l.b16 %v265
    %v465 = vunpack.c.l.b16 %v266
    %v466 = vunpack.c.l.b16 %v267
    %v467 = vunpack.c.l.b16 %v268
    %v468 = vunpack.c.l.b16 %v269
    %v469 = vunpack.c.l.b16 %v270
    %v470 = vunpack.c.l.b16 %v271
    %v471 = vunpack.c.l.b16 %v272
    %v472 = vunpack.c.l.b16 %v273
    %v473 = vunpack.c.l.b16 %v274
    %v474 = vpack.c.b16 %v379, %v378
    %v475 = vpack.c.b16 %v381, %v380
    %v476 = vpack.c.b16 %v383, %v382
    %v477 = vpack.c.b16 %v385, %v384
    %v478 = vpack.c.b16 %v387, %v386
    %v479 = vpack.c.b16 %v389, %v388
    %v480 = vpack.c.b16 %v391, %v390
    %v481 = vpack.c.b16 %v393, %v392
    %v482 = vpack.c.b16 %v395, %v394
    %v483 = vpack.c.b16 %v397, %v396
    %v484 = vpack.c.b16 %v399, %v398
    %v485 = vpack.c.b16 %v401, %v400
    %v486 = vpack.c.b16 %v403, %v402
    %v487 = vpack.c.b16 %v405, %v404
    %v488 = vpack.c.b16 %v407, %v406
    %v489 = vpack.c.b16 %v409, %v408
    %v490 = vpack.c.b16 %v411, %v410
    %v491 = vpack.c.b16 %v413, %v412
    %v492 = vpack.c.b16 %v415, %v414
    %v493 = vpack.c.b16 %v417, %v416
    %v494 = vpack.c.b16 %v419, %v418
    %v495 = vpack.c.b16 %v421, %v420
    %v496 = vpack.c.b16 %v423, %v422
    %v497 = vpack.c.b16 %v425, %v424
    %v498 = vpack.c.b16 %v427, %v426
    %v499 = vpack.c.b16 %v429, %v428
    %v500 = vpack.c.b16 %v431, %v430
    %v501 = vpack.c.b16 %v433, %v432
    %v502 = vpack.c.b16 %v435, %v434
    %v503 = vpack.c.b16 %v437, %v436
    %v504 = vpack.c.b16 %v439, %v438
    %v505 = vpack.c.b16 %v441, %v440
    %v506 = vpack.c.b16 %v443, %v442
    %v507 = vpack.c.b16 %v445, %v444
    %v508 = vpack.c.b16 %v447, %v446
    %v509 = vpack.c.b16 %v449, %v448
    %v510 = vpack.c.b16 %v451, %v450
    %v511 = vpack.c.b16 %v453, %v452
    %v512 = vpack.c.b16 %v455, %v454
    %v513 = vpack.c.b16 %v457, %v456
    %v514 = vpack.c.b16 %v459, %v458
    %v515 = vpack.c.b16 %v461, %v460
    %v516 = vpack.c.b16 %v463, %v462
    %v517 = vpack.c.b16 %v465, %v464
    %v518 = vpack.c.b16 %v467, %v466
    %v519 = vpack.c.b16 %v469, %v468
    %v520 = vpack.c.b16 %v471, %v470
    %v521 = vpack.c.b16 %v473, %v472
    %570 = vmatprep.subr.bf16.mxu0 0
    %571 = vmatpush1.bf16.msra.mxu0 %v481
    %572 = vmatprep.subr.bf16.mxu0 0
    %573 = vmatpush1.bf16.msra.mxu0 %v480
    %574 = vmatprep.subr.bf16.mxu0 0
    %575 = vmatpush1.bf16.msra.mxu0 %v479
    %576 = vmatprep.subr.bf16.mxu0 0
    %577 = vmatpush1.bf16.msra.mxu0 %v478
    %578 = vmatprep.subr.bf16.mxu0 0
    %579 = vmatpush1.bf16.msra.mxu0 %v477
    %580 = vmatprep.subr.bf16.mxu0 0
    %581 = vmatpush1.bf16.msra.mxu0 %v476
    %582 = vmatprep.subr.bf16.mxu0 0
    %583 = vmatpush1.bf16.msra.mxu0 %v475
    %584 = vmatprep.subr.bf16.mxu0 0
    %585 = vmatpush1.bf16.msra.mxu0 %v474
    %586 = vmatprep.subr.bf16.mxu0 0
    %587 = vmatpush2.bf16.msra.mxu0 %v489
    %588 = vmatprep.subr.bf16.mxu0 0
    %589 = vmatpush2.bf16.msra.mxu0 %v488
    %590 = vmatprep.subr.bf16.mxu0 0
    %591 = vmatpush2.bf16.msra.mxu0 %v487
    %592 = vmatprep.subr.bf16.mxu0 0
    %593 = vmatpush2.bf16.msra.mxu0 %v486
    %594 = vmatprep.subr.bf16.mxu0 0
    %595 = vmatpush2.bf16.msra.mxu0 %v485
    %596 = vmatprep.subr.bf16.mxu0 0
    %597 = vmatpush2.bf16.msra.mxu0 %v484
    %598 = vmatprep.subr.bf16.mxu0 0
    %599 = vmatpush2.bf16.msra.mxu0 %v483
    %600 = vmatprep.subr.bf16.mxu0 0
    %601 = vmatpush2.bf16.msra.mxu0 %v482
    %602 = vmatprep.mubr.bf16.mxu0 %v49
    %603 = vmatmul.mubr.bf16.gmra.mxu0 %v48
    %v604 = vpop.f32.mrf.mxu0
    %v605 = vadd.f32 %v280, %v604
    %v606 = vpop.f32.mrf.mxu0
    %v607 = vpop.f32.mrf.mxu0
    %v608 = vpop.f32.mrf.mxu0
    %609 = vdwg.mxu0
    %610 = vmatprep.subr.bf16.mxu0 0
    %611 = vmatpush1.bf16.msra.mxu0 %v497
    %612 = vmatprep.subr.bf16.mxu0 0
    %613 = vmatpush1.bf16.msra.mxu0 %v496
    %614 = vmatprep.subr.bf16.mxu0 0
    %615 = vmatpush1.bf16.msra.mxu0 %v495
    %616 = vmatprep.subr.bf16.mxu0 0
    %617 = vmatpush1.bf16.msra.mxu0 %v494
    %618 = vmatprep.subr.bf16.mxu0 0
    %619 = vmatpush1.bf16.msra.mxu0 %v493
    %620 = vmatprep.subr.bf16.mxu0 0
    %621 = vmatpush1.bf16.msra.mxu0 %v492
    %622 = vmatprep.subr.bf16.mxu0 0
    %623 = vmatpush1.bf16.msra.mxu0 %v491
    %624 = vmatprep.subr.bf16.mxu0 0
    %625 = vmatpush1.bf16.msra.mxu0 %v490
    %626 = vmatprep.subr.bf16.mxu0 0
    %627 = vmatpush2.bf16.msra.mxu0 %v505
    %628 = vmatprep.subr.bf16.mxu0 0
    %629 = vmatpush2.bf16.msra.mxu0 %v504
    %630 = vmatprep.subr.bf16.mxu0 0
    %631 = vmatpush2.bf16.msra.mxu0 %v503
    %632 = vmatprep.subr.bf16.mxu0 0
    %633 = vmatpush2.bf16.msra.mxu0 %v502
    %634 = vmatprep.subr.bf16.mxu0 0
    %635 = vmatpush2.bf16.msra.mxu0 %v501
    %636 = vmatprep.subr.bf16.mxu0 0
    %637 = vmatpush2.bf16.msra.mxu0 %v500
    %638 = vmatprep.subr.bf16.mxu0 0
    %639 = vmatpush2.bf16.msra.mxu0 %v499
    %640 = vmatprep.subr.bf16.mxu0 0
    %641 = vmatpush2.bf16.msra.mxu0 %v498
    %642 = vmatprep.mubr.bf16.mxu0 %v51
    %643 = vmatmul.mubr.bf16.gmra.mxu0 %v50
    %v644 = vpop.f32.mrf.mxu0
    %v645 = vadd.f32 %v605, %v644
    %v646 = vpop.f32.mrf.mxu0
    %v647 = vpop.f32.mrf.mxu0
    %v648 = vpop.f32.mrf.mxu0
    %649 = vdwg.mxu0
    %650 = vmatprep.subr.bf16.mxu0 0
    %651 = vmatpush1.bf16.msra.mxu0 %v513
    %652 = vmatprep.subr.bf16.mxu0 0
    %653 = vmatpush1.bf16.msra.mxu0 %v512
    %654 = vmatprep.subr.bf16.mxu0 0
    %655 = vmatpush1.bf16.msra.mxu0 %v511
    %656 = vmatprep.subr.bf16.mxu0 0
    %657 = vmatpush1.bf16.msra.mxu0 %v510
    %658 = vmatprep.subr.bf16.mxu0 0
    %659 = vmatpush1.bf16.msra.mxu0 %v509
    %660 = vmatprep.subr.bf16.mxu0 0
    %661 = vmatpush1.bf16.msra.mxu0 %v508
    %662 = vmatprep.subr.bf16.mxu0 0
    %663 = vmatpush1.bf16.msra.mxu0 %v507
    %664 = vmatprep.subr.bf16.mxu0 0
    %665 = vmatpush1.bf16.msra.mxu0 %v506
    %666 = vmatprep.subr.bf16.mxu0 0
    %667 = vmatpush2.bf16.msra.mxu0 %v521
    %668 = vmatprep.subr.bf16.mxu0 0
    %669 = vmatpush2.bf16.msra.mxu0 %v520
    %670 = vmatprep.subr.bf16.mxu0 0
    %671 = vmatpush2.bf16.msra.mxu0 %v519
    %672 = vmatprep.subr.bf16.mxu0 0
    %673 = vmatpush2.bf16.msra.mxu0 %v518
    %674 = vmatprep.subr.bf16.mxu0 0
    %675 = vmatpush2.bf16.msra.mxu0 %v517
    %676 = vmatprep.subr.bf16.mxu0 0
    %677 = vmatpush2.bf16.msra.mxu0 %v516
    %678 = vmatprep.subr.bf16.mxu0 0
    %679 = vmatpush2.bf16.msra.mxu0 %v515
    %680 = vmatprep.subr.bf16.mxu0 0
    %681 = vmatpush2.bf16.msra.mxu0 %v514
    %682 = vmatprep.mubr.bf16.mxu0 %v53
    %683 = vmatmul.mubr.bf16.gmra.mxu0 %v52
    %v684 = vpop.f32.mrf.mxu0
    %v685 = vadd.f32 %v645, %v684
    %v686 = vpop.f32.mrf.mxu0
    %v687 = vpop.f32.mrf.mxu0
    %v688 = vpop.f32.mrf.mxu0
    %689 = vdwg.mxu0
    %v690 = vsel %vm121, %v685, 0.0
    %691 = vadd.xlane.f32.xlu0 %v690
    %v692 = vpop.xlane.xlu0 %691
    %v693 = vrcp.pop 16.0
    %v694 = vmul.f32 %v692, %v693
    %v695 = vmul.f32 %v685, %v685
    %v696 = vsel %vm121, %v695, 0.0
    %697 = vadd.xlane.f32.xlu0 %v696
    %v698 = vpop.xlane.xlu0 %697
    %v699 = vmul.f32 %v698, %v693
    %v700 = vmul.f32 %v694, %v694
    %v701 = vsub.f32 %v699, %v700
    %v702 = vsub.f32 %v685, %v694
    %v703 = vadd.f32 %v701, 1e-05
    %v704 = vrsqrt.pop %v703
    %v705 = vmul.f32 %v702, %v704
    %v706 = vld [vmem:[%s9] sm:$0x1]
    %v708 = vlaneseq
    %v709 = vshrl.u32 %v708, 7
    %v710 = vsub.s32 0, %v709
    %v711 = vrot.slane %v706, %v710
    %v713 = vmul.f32 %v705, %v711
    %v714 = vld [vmem:[%s10] sm:$0x1]
    %v716 = vlaneseq
    %v717 = vshrl.u32 %v716, 7
    %v718 = vsub.s32 0, %v717
    %v719 = vrot.slane %v714, %v718
    %v721 = vadd.f32 %v713, %v719
    %v722 = vsub.f32 0.0, %v721
    %v723 = vmul.f32 %v722, 1.442695
    %v724 = vpow.pop %v723
    %v725 = vadd.f32 %v724, 1.0
    %v726 = vrcp.pop %v725
    %v727 = vld [vmem:[%s6] sm:$0xf]
    %v728 = vld [vmem:[%s4] sm:$0x1]
    %v730 = vlaneseq
    %v731 = vshrl.u32 %v730, 7
    %v732 = vsub.s32 0, %v731
    %v733 = vrot.slane %v728, %v732
    %vm735 = vcmask 31744
    %v737 = vsel %vm735, %v174, 0
    %vm739 = vcmask 1043456
    %v741 = vsel %vm739, %v727, 0
    %743 = vmatprep.subr.mxu0 0.0
    %744 = vmatpush1.msra.mxu0 0.0
    %745 = vmatprep.subr.mxu0 0.0
    %746 = vmatpush1.msra.mxu0 0.0
    %747 = vmatprep.subr.mxu0 0.0
    %748 = vmatpush1.msra.mxu0 0.0
    %749 = vmatprep.subr.mxu0 0.0
    %750 = vmatpush1.msra.mxu0 0.0
    %751 = vmatprep.subr.mxu0 0.0
    %752 = vmatpush1.msra.mxu0 0.0
    %753 = vmatprep.subr.mxu0 0.0
    %754 = vmatpush1.msra.mxu0 0.0
    %755 = vmatprep.subr.mxu0 0.0
    %756 = vmatpush1.msra.mxu0 0.0
    %757 = vmatprep.subr.mxu0 0.0
    %758 = vmatpush1.msra.mxu0 0.0
    %759 = vmatprep.subr.mxu0 0.0
    %760 = vmatpush1.msra.mxu0 0.0
    %761 = vmatprep.subr.mxu0 0.0
    %762 = vmatpush1.msra.mxu0 0.0
    %763 = vmatprep.subr.mxu0 0.0
    %764 = vmatpush1.msra.mxu0 0.0
    %765 = vmatprep.subr.mxu0 0.0
    %766 = vmatpush1.msra.mxu0 0.0
    %767 = vmatprep.subr.mxu0 0.0
    %768 = vmatpush1.msra.mxu0 0.0
    %769 = vmatprep.subr.mxu0 0.0
    %770 = vmatpush1.msra.mxu0 0.0
    %771 = vmatprep.subr.mxu0 0.0
    %772 = vmatpush1.msra.mxu0 0.0
    %773 = vmatprep.subr.mxu0 0.0
    %774 = vmatpush1.msra.mxu0 %v741
    %775 = vmatprep.subr.mxu0 0.0
    %776 = vmatpush2.msra.mxu0 0.0
    %777 = vmatprep.subr.mxu0 0.0
    %778 = vmatpush2.msra.mxu0 0.0
    %779 = vmatprep.subr.mxu0 0.0
    %780 = vmatpush2.msra.mxu0 0.0
    %781 = vmatprep.subr.mxu0 0.0
    %782 = vmatpush2.msra.mxu0 0.0
    %783 = vmatprep.subr.mxu0 0.0
    %784 = vmatpush2.msra.mxu0 0.0
    %785 = vmatprep.subr.mxu0 0.0
    %786 = vmatpush2.msra.mxu0 0.0
    %787 = vmatprep.subr.mxu0 0.0
    %788 = vmatpush2.msra.mxu0 0.0
    %789 = vmatprep.subr.mxu0 0.0
    %790 = vmatpush2.msra.mxu0 0.0
    %791 = vmatprep.subr.mxu0 0.0
    %792 = vmatpush2.msra.mxu0 0.0
    %793 = vmatprep.subr.mxu0 0.0
    %794 = vmatpush2.msra.mxu0 0.0
    %795 = vmatprep.subr.mxu0 0.0
    %796 = vmatpush2.msra.mxu0 0.0
    %797 = vmatprep.subr.mxu0 0.0
    %798 = vmatpush2.msra.mxu0 0.0
    %799 = vmatprep.subr.mxu0 0.0
    %800 = vmatpush2.msra.mxu0 0.0
    %801 = vmatprep.subr.mxu0 0.0
    %802 = vmatpush2.msra.mxu0 0.0
    %803 = vmatprep.subr.mxu0 0.0
    %804 = vmatpush2.msra.mxu0 0.0
    %805 = vmatprep.subr.mxu0 0.0
    %806 = vmatpush2.msra.mxu0 0.0
    %807 = vmatprep.mubr.f32.mxu0 0.0
    %808 = vmatmul.mubr.f32.gmra.mxu0 %v737
    %v809 = vpop.f32.mrf.mxu0
    %v810 = vadd.f32 %v733, %v809
    %v811 = vpop.f32.mrf.mxu0
    %812 = vdwg.mxu0
    %v813 = vld [vmem:[#allocation2] sm:$0xff]
    %v814 = vmul.f32 %v726, %v810
    %v815 = vadd.f32 %v813, %v814
    %816 = vst.msk [vmem:[#allocation2] sm:$0xff] %vm121, %v815
    %818 = vrot.lane.b32.xlu0 %v685, 112
    %v819 = vpop.permute.xlu0 %818
    %v821 = vsel %vm121, %v819, 0.0
    %822 = vadd.xlane.f32.xlu0 %v821
    %v823 = vpop.xlane.xlu0 %822
    %v824 = vmul.f32 %v823, %v693
    %826 = vrot.lane.b32.xlu0 %v695, 112
    %v827 = vpop.permute.xlu0 %826
    %v829 = vsel %vm121, %v827, 0.0
    %830 = vadd.xlane.f32.xlu0 %v829
    %v831 = vpop.xlane.xlu0 %830
    %v832 = vmul.f32 %v831, %v693
    %v833 = vmul.f32 %v824, %v824
    %v834 = vsub.f32 %v832, %v833
    %v835 = vsub.f32 %v685, %v824
    %v836 = vadd.f32 %v834, 1e-05
    %v837 = vrsqrt.pop %v836
    %v838 = vmul.f32 %v835, %v837
    %v839 = vld [vmem:[%s9] sm:$0x1]
    %v841 = vlaneseq
    %v842 = vshrl.u32 %v841, 7
    %v843 = vsub.s32 0, %v842
    %v844 = vrot.slane %v839, %v843
    %v846 = vmul.f32 %v838, %v844
    %v847 = vld [vmem:[%s10] sm:$0x1]
    %v849 = vlaneseq
    %v850 = vshrl.u32 %v849, 7
    %v851 = vsub.s32 0, %v850
    %v852 = vrot.slane %v847, %v851
    %v854 = vadd.f32 %v846, %v852
    %v855 = vsub.f32 0.0, %v854
    %v856 = vmul.f32 %v855, 1.442695
    %v857 = vpow.pop %v856
    %v858 = vadd.f32 %v857, 1.0
    %v859 = vrcp.pop %v858
    %s860 = scalar_lea.vmem %s6, 4
    %v861 = vld [vmem:[%s860] sm:$0xf]
    %v862 = vld [vmem:[%s4] sm:$0x1]
    %v864 = vlaneseq
    %v865 = vshrl.u32 %v864, 7
    %v866 = vsub.s32 0, %v865
    %v867 = vrot.slane %v862, %v866
    %869 = vrot.lane.b32.xlu0 %v174, 124
    %v870 = vpop.permute.xlu0 %869
    %v871 = vsel %vm735, %v870, 0
    %v874 = vsel %vm739, %v861, 0
    %876 = vmatprep.subr.mxu0 0.0
    %877 = vmatpush1.msra.mxu0 0.0
    %878 = vmatprep.subr.mxu0 0.0
    %879 = vmatpush1.msra.mxu0 0.0
    %880 = vmatprep.subr.mxu0 0.0
    %881 = vmatpush1.msra.mxu0 0.0
    %882 = vmatprep.subr.mxu0 0.0
    %883 = vmatpush1.msra.mxu0 0.0
    %884 = vmatprep.subr.mxu0 0.0
    %885 = vmatpush1.msra.mxu0 0.0
    %886 = vmatprep.subr.mxu0 0.0
    %887 = vmatpush1.msra.mxu0 0.0
    %888 = vmatprep.subr.mxu0 0.0
    %889 = vmatpush1.msra.mxu0 0.0
    %890 = vmatprep.subr.mxu0 0.0
    %891 = vmatpush1.msra.mxu0 0.0
    %892 = vmatprep.subr.mxu0 0.0
    %893 = vmatpush1.msra.mxu0 0.0
    %894 = vmatprep.subr.mxu0 0.0
    %895 = vmatpush1.msra.mxu0 0.0
    %896 = vmatprep.subr.mxu0 0.0
    %897 = vmatpush1.msra.mxu0 0.0
    %898 = vmatprep.subr.mxu0 0.0
    %899 = vmatpush1.msra.mxu0 0.0
    %900 = vmatprep.subr.mxu0 0.0
    %901 = vmatpush1.msra.mxu0 0.0
    %902 = vmatprep.subr.mxu0 0.0
    %903 = vmatpush1.msra.mxu0 0.0
    %904 = vmatprep.subr.mxu0 0.0
    %905 = vmatpush1.msra.mxu0 0.0
    %906 = vmatprep.subr.mxu0 0.0
    %907 = vmatpush1.msra.mxu0 %v874
    %908 = vmatprep.subr.mxu0 0.0
    %909 = vmatpush2.msra.mxu0 0.0
    %910 = vmatprep.subr.mxu0 0.0
    %911 = vmatpush2.msra.mxu0 0.0
    %912 = vmatprep.subr.mxu0 0.0
    %913 = vmatpush2.msra.mxu0 0.0
    %914 = vmatprep.subr.mxu0 0.0
    %915 = vmatpush2.msra.mxu0 0.0
    %916 = vmatprep.subr.mxu0 0.0
    %917 = vmatpush2.msra.mxu0 0.0
    %918 = vmatprep.subr.mxu0 0.0
    %919 = vmatpush2.msra.mxu0 0.0
    %920 = vmatprep.subr.mxu0 0.0
    %921 = vmatpush2.msra.mxu0 0.0
    %922 = vmatprep.subr.mxu0 0.0
    %923 = vmatpush2.msra.mxu0 0.0
    %924 = vmatprep.subr.mxu0 0.0
    %925 = vmatpush2.msra.mxu0 0.0
    %926 = vmatprep.subr.mxu0 0.0
    %927 = vmatpush2.msra.mxu0 0.0
    %928 = vmatprep.subr.mxu0 0.0
    %929 = vmatpush2.msra.mxu0 0.0
    %930 = vmatprep.subr.mxu0 0.0
    %931 = vmatpush2.msra.mxu0 0.0
    %932 = vmatprep.subr.mxu0 0.0
    %933 = vmatpush2.msra.mxu0 0.0
    %934 = vmatprep.subr.mxu0 0.0
    %935 = vmatpush2.msra.mxu0 0.0
    %936 = vmatprep.subr.mxu0 0.0
    %937 = vmatpush2.msra.mxu0 0.0
    %938 = vmatprep.subr.mxu0 0.0
    %939 = vmatpush2.msra.mxu0 0.0
    %940 = vmatprep.mubr.f32.mxu0 0.0
    %941 = vmatmul.mubr.f32.gmra.mxu0 %v871
    %v942 = vpop.f32.mrf.mxu0
    %v943 = vadd.f32 %v867, %v942
    %v944 = vpop.f32.mrf.mxu0
    %945 = vdwg.mxu0
    %v946 = vld [vmem:[#allocation2] sm:$0xff]
    %948 = vrot.lane.b32.xlu0 %v943, 16
    %v949 = vpop.permute.xlu0 %948
    %v951 = vmul.f32 %v859, %v949
    %953 = vrot.lane.b32.xlu0 %v951, 112
    %v954 = vpop.permute.xlu0 %953
    %v956 = vadd.f32 %v946, %v954
    %957 = vst.msk [vmem:[#allocation2] sm:$0xff] %vm121, %v956
    %958 = vrot.lane.b32.xlu0 %v685, 96
    %v959 = vpop.permute.xlu0 %958
    %v961 = vsel %vm121, %v959, 0.0
    %962 = vadd.xlane.f32.xlu0 %v961
    %v963 = vpop.xlane.xlu0 %962
    %v964 = vmul.f32 %v963, %v693
    %965 = vrot.lane.b32.xlu0 %v695, 96
    %v966 = vpop.permute.xlu0 %965
    %v968 = vsel %vm121, %v966, 0.0
    %969 = vadd.xlane.f32.xlu0 %v968
    %v970 = vpop.xlane.xlu0 %969
    %v971 = vmul.f32 %v970, %v693
    %v972 = vmul.f32 %v964, %v964
    %v973 = vsub.f32 %v971, %v972
    %v974 = vsub.f32 %v685, %v964
    %v975 = vadd.f32 %v973, 1e-05
    %v976 = vrsqrt.pop %v975
    %v977 = vmul.f32 %v974, %v976
    %v978 = vld [vmem:[%s9] sm:$0x1]
    %v980 = vlaneseq
    %v981 = vshrl.u32 %v980, 7
    %v982 = vsub.s32 0, %v981
    %v983 = vrot.slane %v978, %v982
    %v985 = vmul.f32 %v977, %v983
    %v986 = vld [vmem:[%s10] sm:$0x1]
    %v988 = vlaneseq
    %v989 = vshrl.u32 %v988, 7
    %v990 = vsub.s32 0, %v989
    %v991 = vrot.slane %v986, %v990
    %v993 = vadd.f32 %v985, %v991
    %v994 = vsub.f32 0.0, %v993
    %v995 = vmul.f32 %v994, 1.442695
    %v996 = vpow.pop %v995
    %v997 = vadd.f32 %v996, 1.0
    %v998 = vrcp.pop %v997
    %s999 = scalar_lea.vmem %s6, 8
    %v1000 = vld [vmem:[%s999] sm:$0xf]
    %v1001 = vld [vmem:[%s4] sm:$0x1]
    %v1003 = vlaneseq
    %v1004 = vshrl.u32 %v1003, 7
    %v1005 = vsub.s32 0, %v1004
    %v1006 = vrot.slane %v1001, %v1005
    %1008 = vrot.lane.b32.xlu0 %v174, 120
    %v1009 = vpop.permute.xlu0 %1008
    %v1010 = vsel %vm735, %v1009, 0
    %v1013 = vsel %vm739, %v1000, 0
    %1015 = vmatprep.subr.mxu0 0.0
    %1016 = vmatpush1.msra.mxu0 0.0
    %1017 = vmatprep.subr.mxu0 0.0
    %1018 = vmatpush1.msra.mxu0 0.0
    %1019 = vmatprep.subr.mxu0 0.0
    %1020 = vmatpush1.msra.mxu0 0.0
    %1021 = vmatprep.subr.mxu0 0.0
    %1022 = vmatpush1.msra.mxu0 0.0
    %1023 = vmatprep.subr.mxu0 0.0
    %1024 = vmatpush1.msra.mxu0 0.0
    %1025 = vmatprep.subr.mxu0 0.0
    %1026 = vmatpush1.msra.mxu0 0.0
    %1027 = vmatprep.subr.mxu0 0.0
    %1028 = vmatpush1.msra.mxu0 0.0
    %1029 = vmatprep.subr.mxu0 0.0
    %1030 = vmatpush1.msra.mxu0 0.0
    %1031 = vmatprep.subr.mxu0 0.0
    %1032 = vmatpush1.msra.mxu0 0.0
    %1033 = vmatprep.subr.mxu0 0.0
    %1034 = vmatpush1.msra.mxu0 0.0
    %1035 = vmatprep.subr.mxu0 0.0
    %1036 = vmatpush1.msra.mxu0 0.0
    %1037 = vmatprep.subr.mxu0 0.0
    %1038 = vmatpush1.msra.mxu0 0.0
    %1039 = vmatprep.subr.mxu0 0.0
    %1040 = vmatpush1.msra.mxu0 0.0
    %1041 = vmatprep.subr.mxu0 0.0
    %1042 = vmatpush1.msra.mxu0 0.0
    %1043 = vmatprep.subr.mxu0 0.0
    %1044 = vmatpush1.msra.mxu0 0.0
    %1045 = vmatprep.subr.mxu0 0.0
    %1046 = vmatpush1.msra.mxu0 %v1013
    %1047 = vmatprep.subr.mxu0 0.0
    %1048 = vmatpush2.msra.mxu0 0.0
    %1049 = vmatprep.subr.mxu0 0.0
    %1050 = vmatpush2.msra.mxu0 0.0
    %1051 = vmatprep.subr.mxu0 0.0
    %1052 = vmatpush2.msra.mxu0 0.0
    %1053 = vmatprep.subr.mxu0 0.0
    %1054 = vmatpush2.msra.mxu0 0.0
    %1055 = vmatprep.subr.mxu0 0.0
    %1056 = vmatpush2.msra.mxu0 0.0
    %1057 = vmatprep.subr.mxu0 0.0
    %1058 = vmatpush2.msra.mxu0 0.0
    %1059 = vmatprep.subr.mxu0 0.0
    %1060 = vmatpush2.msra.mxu0 0.0
    %1061 = vmatprep.subr.mxu0 0.0
    %1062 = vmatpush2.msra.mxu0 0.0
    %1063 = vmatprep.subr.mxu0 0.0
    %1064 = vmatpush2.msra.mxu0 0.0
    %1065 = vmatprep.subr.mxu0 0.0
    %1066 = vmatpush2.msra.mxu0 0.0
    %1067 = vmatprep.subr.mxu0 0.0
    %1068 = vmatpush2.msra.mxu0 0.0
    %1069 = vmatprep.subr.mxu0 0.0
    %1070 = vmatpush2.msra.mxu0 0.0
    %1071 = vmatprep.subr.mxu0 0.0
    %1072 = vmatpush2.msra.mxu0 0.0
    %1073 = vmatprep.subr.mxu0 0.0
    %1074 = vmatpush2.msra.mxu0 0.0
    %1075 = vmatprep.subr.mxu0 0.0
    %1076 = vmatpush2.msra.mxu0 0.0
    %1077 = vmatprep.subr.mxu0 0.0
    %1078 = vmatpush2.msra.mxu0 0.0
    %1079 = vmatprep.mubr.f32.mxu0 0.0
    %1080 = vmatmul.mubr.f32.gmra.mxu0 %v1010
    %v1081 = vpop.f32.mrf.mxu0
    %v1082 = vadd.f32 %v1006, %v1081
    %v1083 = vpop.f32.mrf.mxu0
    %1084 = vdwg.mxu0
    %v1085 = vld [vmem:[#allocation2] sm:$0xff]
    %1087 = vrot.lane.b32.xlu0 %v1082, 32
    %v1088 = vpop.permute.xlu0 %1087
    %v1090 = vmul.f32 %v998, %v1088
    %1092 = vrot.lane.b32.xlu0 %v1090, 96
    %v1093 = vpop.permute.xlu0 %1092
    %v1095 = vadd.f32 %v1085, %v1093
    %1096 = vst.msk [vmem:[#allocation2] sm:$0xff] %vm121, %v1095
    %v1097 = vld [vmem:[#allocation2] sm:$0xff]
    %1098 = vst.msk [vmem:[#allocation3] sm:$0xff] %vm121, %v1097
    // Predicated region
    $region46: #{mlora_linear_forward.1} parent=1 // pred_check
      _
    $region47: #{mlora_linear_forward.1} parent=1 // pred_check_branch
      %1100 = sbr.rel (0) target = $region49
    $region48: #{mlora_linear_forward.1} parent=1 // pred_region
      %s1102 = ssub.s32 128, 128
      %1103 = vsyncadd [#allocation4], %s1102
      %s1105 = sshll.u32 [#allocation3], 4
      %s1106 = int_to_ptr.vmem [resolvable:$true] %s1105
      %1108 = dma.vmem_to_hbm [thread:$0]  %s1106, 128, %s11, [#allocation4]
    $region49: #{mlora_linear_forward.1} parent=1 // pred_fallthru
      _
    // Predicated region
    $region50: #{mlora_linear_forward.1} parent=1 // pred_check
      _
    $region51: #{mlora_linear_forward.1} parent=1 // pred_check_branch
      %1110 = sbr.rel (0) target = $region53
    $region52: #{mlora_linear_forward.1} parent=1 // pred_region
      %1111 = dma.done [#allocation4], 128
    $region53: #{mlora_linear_forward.1} parent=1 // pred_fallthru
      _
    %1112 = vsyncpa [#allocation4], 1

</llo_original>
